<compile_context>
chip_gen: v6e
topology: v6e:2x2x1
jax: 0.10.0
libtpu: 0.0.40
codegen_flags: <defaults>
</compile_context>

<pallas_src>
import numpy as np
import jax
import jax.numpy as jnp
from jax.experimental import pallas as pl
from jax.experimental.pallas import tpu as pltpu

_LANE = 128
_VMEM_LIMIT = 32 * 1024 * 1024   # safe on v5e/v6e (128 MiB phys) and v7x (64 MiB phys)


def _round_up(x, m):
    return (x + m - 1) // m * m


def _pad2(a, rows, cols, fill=0.0, dtype=jnp.float32):
    a = jnp.asarray(a, jnp.float32)
    out = jnp.pad(a, ((0, rows - a.shape[0]), (0, cols - a.shape[1])),
                  constant_values=fill)
    return out.astype(dtype)


# ---------------------------------------------------------------------------
# kernels
# ---------------------------------------------------------------------------

def _pre_kernel(x_ref, w_ref, b_ref, h_ref):
    # pre: Linear(nfeat, nhid) on one tile of node rows.  bf16 x bf16 -> f32.
    h = jnp.dot(x_ref[...], w_ref[...],
                preferred_element_type=jnp.float32) + b_ref[...]
    h_ref[...] = h.astype(h_ref.dtype)


def _gin_layer_kernel(bids_ref, bcnt_ref,                # scalar prefetch (SMEM)
                      adj_ref, hsrc_ref, hself_ref,      # streamed / resident tiles
                      w1_ref, b1_ref, w2_ref, b2_ref,    # resident bf16 MLP weights
                      hout_ref, acc_ref):
    """One GINConv layer: h <- relu(MLP(adj @ h + h)), eps = 0."""
    i = pl.program_id(0)      # node-row tile
    k = pl.program_id(1)      # position in this row tile's nonzero-block list
    f32 = jnp.float32
    bf16 = jnp.bfloat16

    @pl.when(k == 0)
    def _init():
        # self-loop term (eps = 0): start the accumulator with this row tile's h
        acc_ref[...] = hself_ref[...].astype(f32)

    # Skip padding entries of the block schedule (all-zero adj tiles).
    @pl.when(k < bcnt_ref[i])
    def _accumulate():
        acc_ref[...] += jnp.dot(adj_ref[...], hsrc_ref[...],
                                preferred_element_type=f32)

    @pl.when(k == pl.num_programs(1) - 1)
    def _finalize():
        agg = acc_ref[...].astype(bf16)
        t = jnp.dot(agg, w1_ref[...], preferred_element_type=f32) + b1_ref[...]
        t = jnp.maximum(t, 0.0).astype(bf16)            # ReLU inside the GIN MLP
        t = jnp.dot(t, w2_ref[...], preferred_element_type=f32) + b2_ref[...]
        hout_ref[...] = jnp.maximum(t, 0.0).astype(hout_ref.dtype)  # F.relu after conv
        # F.dropout(training=False) -> identity
        # TODO(synk): training-mode dropout not implemented (eval semantics only)


def _pool_head_kernel(pool_ref, h_ref,
                      wpost_ref, bpost_ref, wro_ref, bro_ref,
                      out_ref, acc_ref):
    """global_add_pool -> post Linear+ReLU -> readout Linear -> log_softmax."""
    k = pl.program_id(0)
    f32 = jnp.float32
    bf16 = jnp.bfloat16

    @pl.when(k == 0)
    def _init():
        acc_ref[...] = jnp.zeros_like(acc_ref)

    acc_ref[...] += jnp.dot(pool_ref[...], h_ref[...],
                            preferred_element_type=f32)

    @pl.when(k == pl.num_programs(0) - 1)
    def _finalize():
        pooled = acc_ref[...].astype(bf16)
        p = (jnp.dot(pooled, wpost_ref[...], preferred_element_type=f32)
             + bpost_ref[...])
        p = jnp.maximum(p, 0.0).astype(bf16)
        # F.dropout(training=False) -> identity
        logits = (jnp.dot(p, wro_ref[...], preferred_element_type=f32)
                  + bro_ref[...])                        # f32; padded classes -1e30
        m = jnp.max(logits, axis=1, keepdims=True)
        z = logits - m
        lse = jnp.log(jnp.sum(jnp.exp(z), axis=1, keepdims=True))
        out_ref[...] = z - lse


# ---------------------------------------------------------------------------
# wrapper
# ---------------------------------------------------------------------------

def _build_block_schedule(graph_sizes, n_nodes, n_pad, tm, tk):
    """Per row-tile list of TK source blocks that can be nonzero.

    Built purely on the host from graph node counts (graphs are contiguous in
    node index, PyG batching), so there is no device->host sync of adj.
    """
    graph_sizes = np.asarray(graph_sizes, np.int64)
    assert int(graph_sizes.sum()) == n_nodes, "graph_sizes must sum to N"
    nb_r = n_pad // tm
    nb_c = n_pad // tk
    nz = np.zeros((nb_r, nb_c), bool)
    off = 0
    for sz in graph_sizes:
        sz = int(sz)
        if sz <= 0:
            continue
        lo, hi = off, off + sz
        r0, r1 = lo // tm, (hi - 1) // tm
        c0, c1 = lo // tk, (hi - 1) // tk
        nz[r0:r1 + 1, c0:c1 + 1] = True
        off = hi
    counts = nz.sum(axis=1).astype(np.int32)
    max_nb = max(int(counts.max()) if counts.size else 0, 1)
    ids = np.zeros((nb_r, max_nb), np.int32)
    for i in range(nb_r):
        js = np.nonzero(nz[i])[0].astype(np.int32)
        c = int(counts[i])
        if c > 0:
            ids[i, :c] = js
            ids[i, c:] = js[-1]     # repeat last valid block (DMA reuse, guarded)
    return jnp.asarray(ids.reshape(-1)), jnp.asarray(counts), max_nb, counts


def gin_forward(adj, pool, x, params, graph_sizes):
    """adj[t, s] = 1 for edge s->t; pool[g, n] = 1 iff node n belongs to graph g.

    graph_sizes: host array/list of nodes per graph (contiguous node order).
    """
    N, nfeat = x.shape
    G = pool.shape[0]
    nhid = params["w_pre"].shape[1]
    nclass = params["w_ro"].shape[1]
    nlayer = params["w1"].shape[0]

    f32, bf16 = jnp.float32, jnp.bfloat16

    # Row tile (TM) large for pipelining / per-step overhead (v6e/v7x), reduction
    # tile (TK) fine to exploit the block-diagonal adjacency.
    if N >= 8192:
        tm = 1024
    elif N >= 2048:
        tm = 512
    elif N >= 512:
        tm = 256
    else:
        tm = 128
    tk = min(tm, 256)

    n_pad = _round_up(N, tm)
    f_pad = _round_up(nfeat, _LANE)
    h_pad = _round_up(nhid, _LANE)
    c_pad = _round_up(nclass, _LANE)
    g_pad = _round_up(G, 8)
    nb_r = n_pad // tm

    # ---- pad operands to lane / tile boundaries ------------------------------
    adj_b = _pad2(adj, n_pad, n_pad, dtype=bf16)        # raw adj; self-loop in-kernel
    pool_b = _pad2(pool, g_pad, n_pad, dtype=bf16)
    x_b = _pad2(x, n_pad, f_pad, dtype=bf16)

    w_pre = _pad2(params["w_pre"], f_pad, h_pad, dtype=bf16)
    b_pre = _pad2(params["b_pre"], 1, h_pad)
    w1 = [_pad2(params["w1"][l], h_pad, h_pad, dtype=bf16) for l in range(nlayer)]
    b1 = [_pad2(params["b1"][l], 1, h_pad) for l in range(nlayer)]
    w2 = [_pad2(params["w2"][l], h_pad, h_pad, dtype=bf16) for l in range(nlayer)]
    b2 = [_pad2(params["b2"][l], 1, h_pad) for l in range(nlayer)]
    w_post = _pad2(params["w_post"], h_pad, h_pad, dtype=bf16)
    b_post = _pad2(params["b_post"], 1, h_pad)
    w_ro = _pad2(params["w_ro"], h_pad, c_pad, dtype=bf16)
    b_ro = _pad2(params["b_ro"], 1, c_pad, fill=-1e30)   # f32 softmax path

    # ---- host-side block schedule (no dense-adj device->host sync) -----------
    block_ids, block_counts, max_nb, counts_np = _build_block_schedule(
        graph_sizes, N, n_pad, tm, tk)

    cparams_par = pltpu.CompilerParams(dimension_semantics=("parallel",),
                                       vmem_limit_bytes=_VMEM_LIMIT)

    # ---- pre: Linear(nfeat, nhid) ---------------------------------------------
    h = pl.pallas_call(
        _pre_kernel,
        out_shape=jax.ShapeDtypeStruct((n_pad, h_pad), bf16),
        grid_spec=pltpu.PrefetchScalarGridSpec(
            num_scalar_prefetch=0,
            grid=(nb_r,),
            in_specs=[pl.BlockSpec((tm, f_pad), lambda i: (i, 0)),
                      pl.BlockSpec((f_pad, h_pad), lambda i: (0, 0)),
                      pl.BlockSpec((1, h_pad), lambda i: (0, 0))],
            out_specs=pl.BlockSpec((tm, h_pad), lambda i: (i, 0)),
        ),
        compiler_params=cparams_par,
    )(x_b, w_pre, b_pre)

    # ---- GIN layers ------------------------------------------------------------
    nnz = int(counts_np.sum())
    layer_cost = pl.CostEstimate(
        flops=int(2 * nnz * tm * tk * h_pad + 4 * n_pad * h_pad * h_pad),
        transcendentals=0,
        bytes_accessed=int(nnz * tm * tk * 2           # adj blocks (bf16)
                           + nnz * tk * h_pad * 2      # streamed h source blocks
                           + 2 * n_pad * h_pad * 2     # h_self in + h out (bf16)
                           + 2 * h_pad * h_pad * 2))   # MLP weights (bf16)

    adj_spec = pl.BlockSpec(
        (tm, tk), lambda i, k, bids, bcnt: (i, bids[i * max_nb + k]))
    hsrc_spec = pl.BlockSpec(
        (tk, h_pad), lambda i, k, bids, bcnt: (bids[i * max_nb + k], 0))
    hself_spec = pl.BlockSpec((tm, h_pad), lambda i, k, bids, bcnt: (i, 0))
    wmat_spec = pl.BlockSpec((h_pad, h_pad), lambda i, k, bids, bcnt: (0, 0))
    bvec_spec = pl.BlockSpec((1, h_pad), lambda i, k, bids, bcnt: (0, 0))
    hout_spec = pl.BlockSpec((tm, h_pad), lambda i, k, bids, bcnt: (i, 0))

    layer_call = pl.pallas_call(
        _gin_layer_kernel,
        out_shape=jax.ShapeDtypeStruct((n_pad, h_pad), bf16),
        grid_spec=pltpu.PrefetchScalarGridSpec(
            num_scalar_prefetch=2,
            grid=(nb_r, max_nb),                    # reduction (source blocks) last
            in_specs=[adj_spec, hsrc_spec, hself_spec,
                      wmat_spec, bvec_spec, wmat_spec, bvec_spec],
            out_specs=hout_spec,
            scratch_shapes=[pltpu.VMEM((tm, h_pad), f32)],
        ),
        compiler_params=pltpu.CompilerParams(
            dimension_semantics=("parallel", "arbitrary"),
            vmem_limit_bytes=_VMEM_LIMIT),
        cost_estimate=layer_cost,
    )

    for l in range(nlayer):
        h = layer_call(block_ids, block_counts, adj_b, h, h,
                       w1[l], b1[l], w2[l], b2[l])

    # ---- global_add_pool + post + readout + log_softmax ------------------------
    out = pl.pallas_call(
        _pool_head_kernel,
        out_shape=jax.ShapeDtypeStruct((g_pad, c_pad), f32),
        grid_spec=pltpu.PrefetchScalarGridSpec(
            num_scalar_prefetch=0,
            grid=(nb_r,),                           # reduction over node row tiles
            in_specs=[pl.BlockSpec((g_pad, tm), lambda k: (0, k)),
                      pl.BlockSpec((tm, h_pad), lambda k: (k, 0)),
                      pl.BlockSpec((h_pad, h_pad), lambda k: (0, 0)),
                      pl.BlockSpec((1, h_pad), lambda k: (0, 0)),
                      pl.BlockSpec((h_pad, c_pad), lambda k: (0, 0)),
                      pl.BlockSpec((1, c_pad), lambda k: (0, 0))],
            out_specs=pl.BlockSpec((g_pad, c_pad), lambda k: (0, 0)),
            scratch_shapes=[pltpu.VMEM((g_pad, h_pad), f32)],
        ),
        compiler_params=pltpu.CompilerParams(
            dimension_semantics=("arbitrary",),
            vmem_limit_bytes=_VMEM_LIMIT),
    )(pool_b, h, w_post, b_post, w_ro, b_ro)

    return out[:G, :nclass]


# ---------------------------------------------------------------------------
# references & params
# ---------------------------------------------------------------------------

def gin_reference(adj, pool, x, params):
    """Pure-f32 JAX reference (matches the PyTorch module in eval mode)."""
    h = x @ params["w_pre"] + params["b_pre"]
    for l in range(params["w1"].shape[0]):
        agg = adj @ h + h
        t = jnp.maximum(agg @ params["w1"][l] + params["b1"][l], 0.0)
        t = t @ params["w2"][l] + params["b2"][l]
        h = jnp.maximum(t, 0.0)
    pooled = pool @ h
    p = jnp.maximum(pooled @ params["w_post"] + params["b_post"], 0.0)
    logits = p @ params["w_ro"] + params["b_ro"]
    return jax.nn.log_softmax(logits, axis=1)


def gin_reference_mixed(adj, pool, x, params):
    """Reference with the same bf16-at-the-MXU / bf16-carried-h policy."""
    f32, bf16 = jnp.float32, jnp.bfloat16

    def dotb(a, b):
        return jnp.dot(a.astype(bf16), b.astype(bf16), preferred_element_type=f32)

    adj_b = adj.astype(bf16)
    pool_b = pool.astype(bf16)
    h = (dotb(x, params["w_pre"]) + params["b_pre"]).astype(bf16)
    for l in range(params["w1"].shape[0]):
        agg = jnp.dot(adj_b, h, preferred_element_type=f32) + h.astype(f32)
        t = jnp.maximum(dotb(agg, params["w1"][l]) + params["b1"][l], 0.0)
        t = dotb(t, params["w2"][l]) + params["b2"][l]
        h = jnp.maximum(t, 0.0).astype(bf16)
    pooled = jnp.dot(pool_b, h, preferred_element_type=f32)
    p = jnp.maximum(dotb(pooled, params["w_post"]) + params["b_post"], 0.0)
    logits = dotb(p, params["w_ro"]) + params["b_ro"]
    return jax.nn.log_softmax(logits, axis=1)


def init_params(key, nfeat, nhid, nclass, nlayer):
    ks = jax.random.split(key, 10)
    s = 0.1
    return {
        "w_pre": s * jax.random.normal(ks[0], (nfeat, nhid), jnp.float32),
        "b_pre": s * jax.random.normal(ks[1], (1, nhid), jnp.float32),
        "w1": s * jax.random.normal(ks[2], (nlayer, nhid, nhid), jnp.float32),
        "b1": s * jax.random.normal(ks[3], (nlayer, 1, nhid), jnp.float32),
        "w2": s * jax.random.normal(ks[4], (nlayer, nhid, nhid), jnp.float32),
        "b2": s * jax.random.normal(ks[5], (nlayer, 1, nhid), jnp.float32),
        "w_post": s * jax.random.normal(ks[6], (nhid, nhid), jnp.float32),
        "b_post": s * jax.random.normal(ks[7], (1, nhid), jnp.float32),
        "w_ro": s * jax.random.normal(ks[8], (nhid, nclass), jnp.float32),
        "b_ro": s * jax.random.normal(ks[9], (1, nclass), jnp.float32),
    }


if __name__ == "__main__":
    key = jax.random.PRNGKey(0)
    k_x, k_p = jax.random.split(key)

    # small synthetic batch of 2 graphs, 8 nodes each
    N, G = 16, 2
    nfeat, nhid, nclass, nlayer = 16, 32, 4, 2
    graph_sizes = np.array([8, 8], np.int32)

    batch = jnp.concatenate([jnp.zeros(8, jnp.int32), jnp.ones(8, jnp.int32)])

    # undirected ring within each graph (edges both directions)
    src, dst = [], []
    for g in range(G):
        base = g * 8
        for i in range(8):
            a, b = base + i, base + (i + 1) % 8
            src += [a, b]
            dst += [b, a]
    src = jnp.array(src, jnp.int32)
    dst = jnp.array(dst, jnp.int32)

    # dense adjacency: adj[target, source] = 1  (message x_j flows src -> dst)
    adj = jnp.zeros((N, N), jnp.float32).at[dst, src].set(1.0)
    # dense pooling matrix: pool[g, n] = 1 iff batch[n] == g
    pool = (batch[None, :] == jnp.arange(G)[:, None]).astype(jnp.float32)

    x = jax.random.normal(k_x, (N, nfeat), jnp.float32)
    params = init_params(k_p, nfeat, nhid, nclass, nlayer)

    out = gin_forward(adj, pool, x, params, graph_sizes)
    out = jax.block_until_ready(out)
    assert out.shape == (G, nclass)
    assert not bool(jnp.any(jnp.isnan(out)))

    ref_mixed = gin_reference_mixed(adj, pool, x, params)   # same bf16 policy
    ref_f32 = gin_reference(adj, pool, x, params)           # module semantics
    assert jnp.allclose(out, ref_mixed, atol=2e-2, rtol=2e-2), (out, ref_mixed)
    assert jnp.allclose(out, ref_f32, atol=6e-2, rtol=6e-2), (out, ref_f32)

    print("KERNEL_OK")
</pallas_src>

<mosaic_0001>
module attributes {stable_mosaic.version = 11 : i64} {
  func.func @_pre_kernel(%arg0: i32, %arg1: memref<128x128xbf16, #tpu.memory_space<vmem>>, %arg2: memref<128x128xbf16, #tpu.memory_space<vmem>>, %arg3: memref<1x128xf32, #tpu.memory_space<vmem>>, %arg4: memref<128x128xbf16, #tpu.memory_space<vmem>>) attributes {dimension_semantics = [#tpu.dimension_semantics<parallel>], iteration_bounds = array<i64: 1>, scalar_prefetch = 0 : i64, scratch_operands = 0 : i64, tpu.core_type = #tpu.core_type<tc>, window_params = [{transform_indices = @transform_0, window_bounds = array<i64: 128, 128>}, {pipeline_mode = #tpu.pipeline_mode<synchronous>, transform_indices = @transform_1, window_bounds = array<i64: 128, 128>}, {pipeline_mode = #tpu.pipeline_mode<synchronous>, transform_indices = @transform_2, window_bounds = array<i64: 1, 128>}, {transform_indices = @transform_3, window_bounds = array<i64: 128, 128>}]} {
    %c0 = arith.constant 0 : index
    %c0_0 = arith.constant 0 : index
    %0 = vector.load %arg1[%c0, %c0_0] : memref<128x128xbf16, #tpu.memory_space<vmem>>, vector<128x128xbf16>
    %c0_1 = arith.constant 0 : index
    %c0_2 = arith.constant 0 : index
    %1 = vector.load %arg2[%c0_1, %c0_2] : memref<128x128xbf16, #tpu.memory_space<vmem>>, vector<128x128xbf16>
    %cst = arith.constant dense<0.000000e+00> : vector<128x128xf32>
    %2 = tpu.matmul %0, %1, %cst {dimension_numbers = #tpu.dot_dimension_numbers<[1], [0], [0], [1], [0, 0, 1, 1], [], []>} : vector<128x128xbf16>, vector<128x128xbf16>, vector<128x128xf32> -> vector<128x128xf32>
    %c0_3 = arith.constant 0 : index
    %c0_4 = arith.constant 0 : index
    %3 = vector.load %arg3[%c0_3, %c0_4] : memref<1x128xf32, #tpu.memory_space<vmem>>, vector<1x128xf32>
    %4 = vector.broadcast %3 : vector<1x128xf32> to vector<128x128xf32>
    %5 = arith.addf %2, %4 : vector<128x128xf32>
    %6 = arith.truncf %5 : vector<128x128xf32> to vector<128x128xbf16>
    %c0_5 = arith.constant 0 : index
    %c0_6 = arith.constant 0 : index
    %7 = vector.load %arg4[%c0_5, %c0_6] : memref<128x128xbf16, #tpu.memory_space<vmem>>, vector<128x128xbf16>
    tpu.vector_store %arg4[%c0_5, %c0_6], %6 {strides = array<i32>} : memref<128x128xbf16, #tpu.memory_space<vmem>>, vector<128x128xbf16>,
    return
  }
  func.func @transform_0(%arg0: i32) -> (i32, i32) {
    %c0_i32 = arith.constant 0 : i32
    %c0_i32_0 = arith.constant 0 : i32
    return %arg0, %c0_i32 : i32, i32
  }
  func.func @transform_1(%arg0: i32) -> (i32, i32) {
    %c0_i32 = arith.constant 0 : i32
    %c0_i32_0 = arith.constant 0 : i32
    %c0_i32_1 = arith.constant 0 : i32
    return %c0_i32, %c0_i32_0 : i32, i32
  }
  func.func @transform_2(%arg0: i32) -> (i32, i32) {
    %c0_i32 = arith.constant 0 : i32
    %c0_i32_0 = arith.constant 0 : i32
    %c0_i32_1 = arith.constant 0 : i32
    return %c0_i32, %c0_i32_0 : i32, i32
  }
  func.func @transform_3(%arg0: i32) -> (i32, i32) {
    %c0_i32 = arith.constant 0 : i32
    %c0_i32_0 = arith.constant 0 : i32
    return %arg0, %c0_i32 : i32, i32
  }
}

</mosaic_0001>

<llo_original>
// kernel: tpu_custom_call.1
$region0: #{tpu_custom_call.1}
  #allocation0 [shape = 'u32[]', space=smem, size = 0x4, offset = 0x4, fixed_abs, tag = 'smem constant byte address 0x4 - core index']
  #allocation1 [shape = 'u32[144,128]{1,0:T(1,128)}', space=vmem, size = 0x12000, scoped, tag = 'internal scratch']
  %s0 = inlined_call_operand.hbm [shape: bf16[128,128], index: 0, kind: input, shape index: {}]
  %s1 = inlined_call_operand.hbm [shape: bf16[128,128], index: 1, kind: input, shape index: {}]
  %s2 = inlined_call_operand.vmem [shape: f32[1,128], index: 2, kind: input, shape index: {}]
  %s3 = inlined_call_operand.hbm [shape: bf16[128,128], index: 3, kind: output, shape index: {}]
  %s4 = sld [smem:[#allocation0]]
  $region30: #{tpu_custom_call.1} parent=0
    _
  %s6 = ssub.s32 1, %s4
  %s7 = scalar_select 0, %s6, %s4
  $region1: #{tpu_custom_call.1} parent=0
    #allocation2 [shape = 'u8[32768]{0}', space=vmem, size = 0x8000, scoped, tag = 'input window, operand 0, single buffered']
    #allocation3 [shape = 's32[1]{0}', space=sflag, size = 0x4, scoped, tag = 'scoped memory for tpu_custom_call.1']
    #allocation4 [shape = 's32[1]{0}', space=sflag, size = 0x4, scoped, tag = 'scoped memory for tpu_custom_call.1']
    #allocation5 [shape = 'u8[32768]{0}', space=vmem, size = 0x8000, scoped, tag = 'input window, operand 1, single buffered']
    #allocation6 [shape = 's32[1]{0}', space=sflag, size = 0x4, scoped, tag = 'scoped memory for tpu_custom_call.1']
    #allocation7 [shape = 'u8[32768]{0}', space=vmem, size = 0x8000, scoped, tag = 'output window, operand 0, single buffered']
    %8 = vsyncpa [#allocation3], 0
    %9 = vsyncpa [#allocation6], 0
    %10 = vsyncpa [#allocation4], 0
    // Predicated region
    $region2: #{tpu_custom_call.1} parent=1 // pred_check
      _
    $region3: #{tpu_custom_call.1} parent=1 // pred_check_branch
      %12 = sbr.rel (0) target = $region5
    $region4: #{tpu_custom_call.1} parent=1 // pred_region
      %s14 = ssub.s32 1024, 1024
      %15 = vsyncadd [#allocation3], %s14
      %s16 = sshll.u32 [#allocation2], 4
      %s17 = int_to_ptr.vmem [resolvable:$true] %s16
      %22 = dma.hbm_to_vmem [thread:$0]  %s0, 1024, %s17, [#allocation3], 64, 64, 4
    $region5: #{tpu_custom_call.1} parent=1 // pred_fallthru
      _
    // Predicated region
    $region6: #{tpu_custom_call.1} parent=1 // pred_check
      _
    $region7: #{tpu_custom_call.1} parent=1 // pred_check_branch
      %24 = sbr.rel (0) target = $region9
    $region8: #{tpu_custom_call.1} parent=1 // pred_region
      %s26 = ssub.s32 1024, 1024
      %27 = vsyncadd [#allocation6], %s26
      %s28 = sshll.u32 [#allocation5], 4
      %s29 = int_to_ptr.vmem [resolvable:$true] %s28
      %34 = dma.hbm_to_vmem [thread:$0]  %s1, 1024, %s29, [#allocation6], 64, 64, 4
    $region9: #{tpu_custom_call.1} parent=1 // pred_fallthru
      _
    // Predicated region
    $region10: #{tpu_custom_call.1} parent=1 // pred_check
      _
    $region11: #{tpu_custom_call.1} parent=1 // pred_check_branch
      %36 = sbr.rel (0) target = $region13
    $region12: #{tpu_custom_call.1} parent=1 // pred_region
      _
    $region13: #{tpu_custom_call.1} parent=1 // pred_fallthru
      _
    // Predicated region
    $region14: #{tpu_custom_call.1} parent=1 // pred_check
      _
    $region15: #{tpu_custom_call.1} parent=1 // pred_check_branch
      %38 = sbr.rel (0) target = $region17
    $region16: #{tpu_custom_call.1} parent=1 // pred_region
      %39 = dma.done [#allocation3], 1024
    $region17: #{tpu_custom_call.1} parent=1 // pred_fallthru
      _
    // Predicated region
    $region18: #{tpu_custom_call.1} parent=1 // pred_check
      _
    $region19: #{tpu_custom_call.1} parent=1 // pred_check_branch
      %41 = sbr.rel (0) target = $region21
    $region20: #{tpu_custom_call.1} parent=1 // pred_region
      %42 = dma.done [#allocation6], 1024
    $region21: #{tpu_custom_call.1} parent=1 // pred_fallthru
      _
    %v44 = vld [vmem:[#allocation2] sm:$0xf]
    %v45 = vld [vmem:[#allocation2 + $0x4] sm:$0xf]
    %v46 = vld [vmem:[#allocation2 + $0x8] sm:$0xf]
    %v47 = vld [vmem:[#allocation2 + $0xc] sm:$0xf]
    %v48 = vld [vmem:[#allocation2 + $0x10] sm:$0xf]
    %v49 = vld [vmem:[#allocation2 + $0x14] sm:$0xf]
    %v50 = vld [vmem:[#allocation2 + $0x18] sm:$0xf]
    %v51 = vld [vmem:[#allocation2 + $0x1c] sm:$0xf]
    %v52 = vld [vmem:[#allocation2 + $0x20] sm:$0xf]
    %v53 = vld [vmem:[#allocation2 + $0x24] sm:$0xf]
    %v54 = vld [vmem:[#allocation2 + $0x28] sm:$0xf]
    %v55 = vld [vmem:[#allocation2 + $0x2c] sm:$0xf]
    %v56 = vld [vmem:[#allocation2 + $0x30] sm:$0xf]
    %v57 = vld [vmem:[#allocation2 + $0x34] sm:$0xf]
    %v58 = vld [vmem:[#allocation2 + $0x38] sm:$0xf]
    %v59 = vld [vmem:[#allocation2 + $0x3c] sm:$0xf]
    %v60 = vld [vmem:[#allocation5] sm:$0xf]
    %v61 = vld [vmem:[#allocation5 + $0x4] sm:$0xf]
    %v62 = vld [vmem:[#allocation5 + $0x8] sm:$0xf]
    %v63 = vld [vmem:[#allocation5 + $0xc] sm:$0xf]
    %v64 = vld [vmem:[#allocation5 + $0x10] sm:$0xf]
    %v65 = vld [vmem:[#allocation5 + $0x14] sm:$0xf]
    %v66 = vld [vmem:[#allocation5 + $0x18] sm:$0xf]
    %v67 = vld [vmem:[#allocation5 + $0x1c] sm:$0xf]
    %v68 = vld [vmem:[#allocation5 + $0x20] sm:$0xf]
    %v69 = vld [vmem:[#allocation5 + $0x24] sm:$0xf]
    %v70 = vld [vmem:[#allocation5 + $0x28] sm:$0xf]
    %v71 = vld [vmem:[#allocation5 + $0x2c] sm:$0xf]
    %v72 = vld [vmem:[#allocation5 + $0x30] sm:$0xf]
    %v73 = vld [vmem:[#allocation5 + $0x34] sm:$0xf]
    %v74 = vld [vmem:[#allocation5 + $0x38] sm:$0xf]
    %v75 = vld [vmem:[#allocation5 + $0x3c] sm:$0xf]
    %v76 = vld [vmem:[%s2] sm:$0x1]
    %v78 = vlaneseq
    %v79 = vshrl.u32 %v78, 7
    %v80 = vsub.s32 0, %v79
    %v81 = vrot.slane %v76, %v80
    %v99 = vunpack.c.l.b16 %v44
    %v100 = vunpack.c.l.b16 %v45
    %v101 = vunpack.c.l.b16 %v46
    %v102 = vunpack.c.l.b16 %v47
    %v103 = vunpack.c.l.b16 %v48
    %v104 = vunpack.c.l.b16 %v49
    %v105 = vunpack.c.l.b16 %v50
    %v106 = vunpack.c.l.b16 %v51
    %v107 = vunpack.c.l.b16 %v52
    %v108 = vunpack.c.l.b16 %v53
    %v109 = vunpack.c.l.b16 %v54
    %v110 = vunpack.c.l.b16 %v55
    %v111 = vunpack.c.l.b16 %v56
    %v112 = vunpack.c.l.b16 %v57
    %v113 = vunpack.c.l.b16 %v58
    %v114 = vunpack.c.l.b16 %v59
    %v115 = vpack.c.b16 %v100, %v99
    %v116 = vpack.c.b16 %v102, %v101
    %v117 = vpack.c.b16 %v104, %v103
    %v118 = vpack.c.b16 %v106, %v105
    %v119 = vpack.c.b16 %v108, %v107
    %v120 = vpack.c.b16 %v110, %v109
    %v121 = vpack.c.b16 %v112, %v111
    %v122 = vpack.c.b16 %v114, %v113
    %v147 = vunpack.c.l.b16 %v60
    %v148 = vunpack.c.l.b16 %v61
    %v149 = vunpack.c.l.b16 %v62
    %v150 = vunpack.c.l.b16 %v63
    %v151 = vunpack.c.l.b16 %v64
    %v152 = vunpack.c.l.b16 %v65
    %v153 = vunpack.c.l.b16 %v66
    %v154 = vunpack.c.l.b16 %v67
    %v155 = vunpack.c.l.b16 %v68
    %v156 = vunpack.c.l.b16 %v69
    %v157 = vunpack.c.l.b16 %v70
    %v158 = vunpack.c.l.b16 %v71
    %v159 = vunpack.c.l.b16 %v72
    %v160 = vunpack.c.l.b16 %v73
    %v161 = vunpack.c.l.b16 %v74
    %v162 = vunpack.c.l.b16 %v75
    %v163 = vpack.c.b16 %v148, %v147
    %v164 = vpack.c.b16 %v150, %v149
    %v165 = vpack.c.b16 %v152, %v151
    %v166 = vpack.c.b16 %v154, %v153
    %v167 = vpack.c.b16 %v156, %v155
    %v168 = vpack.c.b16 %v158, %v157
    %v169 = vpack.c.b16 %v160, %v159
    %v170 = vpack.c.b16 %v162, %v161
    %179 = vmatprep.subr.bf16.mxu0 0
    %180 = vmatpush1.bf16.msra.mxu0 %v170
    %181 = vmatprep.subr.bf16.mxu0 0
    %182 = vmatpush1.bf16.msra.mxu0 %v169
    %183 = vmatprep.subr.bf16.mxu0 0
    %184 = vmatpush1.bf16.msra.mxu0 %v168
    %185 = vmatprep.subr.bf16.mxu0 0
    %186 = vmatpush1.bf16.msra.mxu0 %v167
    %187 = vmatprep.subr.bf16.mxu0 0
    %188 = vmatpush1.bf16.msra.mxu0 %v166
    %189 = vmatprep.subr.bf16.mxu0 0
    %190 = vmatpush1.bf16.msra.mxu0 %v165
    %191 = vmatprep.subr.bf16.mxu0 0
    %192 = vmatpush1.bf16.msra.mxu0 %v164
    %193 = vmatprep.subr.bf16.mxu0 0
    %194 = vmatpush1.bf16.msra.mxu0 %v163
    %195 = vmatprep.subr.bf16.mxu0 0
    %196 = vmatpush2.bf16.msra.mxu0 0
    %197 = vmatprep.subr.bf16.mxu0 0
    %198 = vmatpush2.bf16.msra.mxu0 0
    %199 = vmatprep.subr.bf16.mxu0 0
    %200 = vmatpush2.bf16.msra.mxu0 0
    %201 = vmatprep.subr.bf16.mxu0 0
    %202 = vmatpush2.bf16.msra.mxu0 0
    %203 = vmatprep.subr.bf16.mxu0 0
    %204 = vmatpush2.bf16.msra.mxu0 0
    %205 = vmatprep.subr.bf16.mxu0 0
    %206 = vmatpush2.bf16.msra.mxu0 0
    %207 = vmatprep.subr.bf16.mxu0 0
    %208 = vmatpush2.bf16.msra.mxu0 0
    %209 = vmatprep.subr.bf16.mxu0 0
    %210 = vmatpush2.bf16.msra.mxu0 0
    %211 = vmatprep.mubr.bf16.mxu0 0
    %212 = vmatmul.mubr.bf16.gmra.mxu0 %v115
    %v213 = vpop.f32.mrf.mxu0
    %v214 = vadd.f32 %v81, %v213
    %v215 = vpop.f32.mrf.mxu0
    %v216 = vpop.f32.mrf.mxu0
    %v217 = vadd.f32 %v81, %v216
    %v218 = vpop.f32.mrf.mxu0
    %219 = vmatprep.mubr.bf16.mxu0 0
    %220 = vmatmul.mubr.bf16.gmra.mxu0 %v116
    %v221 = vpop.f32.mrf.mxu0
    %v222 = vadd.f32 %v81, %v221
    %v223 = vpop.f32.mrf.mxu0
    %v224 = vpop.f32.mrf.mxu0
    %v225 = vadd.f32 %v81, %v224
    %v226 = vpop.f32.mrf.mxu0
    %227 = vmatprep.mubr.bf16.mxu0 0
    %228 = vmatmul.mubr.bf16.gmra.mxu0 %v117
    %v229 = vpop.f32.mrf.mxu0
    %v230 = vadd.f32 %v81, %v229
    %v231 = vpop.f32.mrf.mxu0
    %v232 = vpop.f32.mrf.mxu0
    %v233 = vadd.f32 %v81, %v232
    %v234 = vpop.f32.mrf.mxu0
    %235 = vmatprep.mubr.bf16.mxu0 0
    %236 = vmatmul.mubr.bf16.gmra.mxu0 %v118
    %v237 = vpop.f32.mrf.mxu0
    %v238 = vadd.f32 %v81, %v237
    %v239 = vpop.f32.mrf.mxu0
    %v240 = vpop.f32.mrf.mxu0
    %v241 = vadd.f32 %v81, %v240
    %v242 = vpop.f32.mrf.mxu0
    %243 = vmatprep.mubr.bf16.mxu0 0
    %244 = vmatmul.mubr.bf16.gmra.mxu0 %v119
    %v245 = vpop.f32.mrf.mxu0
    %v246 = vadd.f32 %v81, %v245
    %v247 = vpop.f32.mrf.mxu0
    %v248 = vpop.f32.mrf.mxu0
    %v249 = vadd.f32 %v81, %v248
    %v250 = vpop.f32.mrf.mxu0
    %251 = vmatprep.mubr.bf16.mxu0 0
    %252 = vmatmul.mubr.bf16.gmra.mxu0 %v120
    %v253 = vpop.f32.mrf.mxu0
    %v254 = vadd.f32 %v81, %v253
    %v255 = vpop.f32.mrf.mxu0
    %v256 = vpop.f32.mrf.mxu0
    %v257 = vadd.f32 %v81, %v256
    %v258 = vpop.f32.mrf.mxu0
    %259 = vmatprep.mubr.bf16.mxu0 0
    %260 = vmatmul.mubr.bf16.gmra.mxu0 %v121
    %v261 = vpop.f32.mrf.mxu0
    %v262 = vadd.f32 %v81, %v261
    %v263 = vpop.f32.mrf.mxu0
    %v264 = vpop.f32.mrf.mxu0
    %v265 = vadd.f32 %v81, %v264
    %v266 = vpop.f32.mrf.mxu0
    %267 = vmatprep.mubr.bf16.mxu0 0
    %268 = vmatmul.mubr.bf16.gmra.mxu0 %v122
    %v269 = vpop.f32.mrf.mxu0
    %v270 = vadd.f32 %v81, %v269
    %v271 = vpop.f32.mrf.mxu0
    %v272 = vpop.f32.mrf.mxu0
    %v273 = vadd.f32 %v81, %v272
    %v274 = vpop.f32.mrf.mxu0
    %275 = vdwg.mxu0
    %v276 = vpack.c.bf16 %v217, %v214
    %v277 = vpack.c.bf16 %v225, %v222
    %v278 = vpack.c.bf16 %v233, %v230
    %v279 = vpack.c.bf16 %v241, %v238
    %v280 = vpack.c.bf16 %v249, %v246
    %v281 = vpack.c.bf16 %v257, %v254
    %v282 = vpack.c.bf16 %v265, %v262
    %v283 = vpack.c.bf16 %v273, %v270
    %v292 = vunpack.c.l.b16 %v276
    %v293 = vunpack.c.h.b16 %v276
    %v294 = vunpack.c.l.b16 %v277
    %v295 = vunpack.c.h.b16 %v277
    %v296 = vunpack.c.l.b16 %v278
    %v297 = vunpack.c.h.b16 %v278
    %v298 = vunpack.c.l.b16 %v279
    %v299 = vunpack.c.h.b16 %v279
    %v300 = vunpack.c.l.b16 %v280
    %v301 = vunpack.c.h.b16 %v280
    %v302 = vunpack.c.l.b16 %v281
    %v303 = vunpack.c.h.b16 %v281
    %v304 = vunpack.c.l.b16 %v282
    %v305 = vunpack.c.h.b16 %v282
    %v306 = vunpack.c.l.b16 %v283
    %v307 = vunpack.c.h.b16 %v283
    %v308 = vpack.c.b16 %v292, %v292
    %v309 = vpack.c.b16 %v293, %v293
    %v310 = vpack.c.b16 %v294, %v294
    %v311 = vpack.c.b16 %v295, %v295
    %v312 = vpack.c.b16 %v296, %v296
    %v313 = vpack.c.b16 %v297, %v297
    %v314 = vpack.c.b16 %v298, %v298
    %v315 = vpack.c.b16 %v299, %v299
    %v316 = vpack.c.b16 %v300, %v300
    %v317 = vpack.c.b16 %v301, %v301
    %v318 = vpack.c.b16 %v302, %v302
    %v319 = vpack.c.b16 %v303, %v303
    %v320 = vpack.c.b16 %v304, %v304
    %v321 = vpack.c.b16 %v305, %v305
    %v322 = vpack.c.b16 %v306, %v306
    %v323 = vpack.c.b16 %v307, %v307
    %340 = vst [vmem:[#allocation7] sm:$0xf] %v308
    %341 = vst [vmem:[#allocation7 + $0x4] sm:$0xf] %v309
    %342 = vst [vmem:[#allocation7 + $0x8] sm:$0xf] %v310
    %343 = vst [vmem:[#allocation7 + $0xc] sm:$0xf] %v311
    %344 = vst [vmem:[#allocation7 + $0x10] sm:$0xf] %v312
    %345 = vst [vmem:[#allocation7 + $0x14] sm:$0xf] %v313
    %346 = vst [vmem:[#allocation7 + $0x18] sm:$0xf] %v314
    %347 = vst [vmem:[#allocation7 + $0x1c] sm:$0xf] %v315
    %348 = vst [vmem:[#allocation7 + $0x20] sm:$0xf] %v316
    %349 = vst [vmem:[#allocation7 + $0x24] sm:$0xf] %v317
    %350 = vst [vmem:[#allocation7 + $0x28] sm:$0xf] %v318
    %351 = vst [vmem:[#allocation7 + $0x2c] sm:$0xf] %v319
    %352 = vst [vmem:[#allocation7 + $0x30] sm:$0xf] %v320
    %353 = vst [vmem:[#allocation7 + $0x34] sm:$0xf] %v321
    %354 = vst [vmem:[#allocation7 + $0x38] sm:$0xf] %v322
    %355 = vst [vmem:[#allocation7 + $0x3c] sm:$0xf] %v323
    // Predicated region
    $region22: #{tpu_custom_call.1} parent=1 // pred_check
      _
    $region23: #{tpu_custom_call.1} parent=1 // pred_check_branch
      %357 = sbr.rel (0) target = $region25
    $region24: #{tpu_custom_call.1} parent=1 // pred_region
      %s359 = ssub.s32 1024, 1024
      %360 = vsyncadd [#allocation4], %s359
      %s361 = sshll.u32 [#allocation7], 4
      %s362 = int_to_ptr.vmem [resolvable:$true] %s361
      %367 = dma.vmem_to_hbm [thread:$0]  %s362, 1024, %s3, [#allocation4], 64, 64, 4
    $region25: #{tpu_custom_call.1} parent=1 // pred_fallthru
      _
    // Predicated region
    $region26: #{tpu_custom_call.1} parent=1 // pred_check
      _
    $region27: #{tpu_custom_call.1} parent=1 // pred_check_branch
      %369 = sbr.rel (0) target = $region29
    $region28: #{tpu_custom_call.1} parent=1 // pred_region
      %370 = dma.done [#allocation4], 1024
    $region29: #{tpu_custom_call.1} parent=1 // pred_fallthru
      _
    %371 = vsyncpa [#allocation3], 1
    %372 = vsyncpa [#allocation6], 1
    %373 = vsyncpa [#allocation4], 1

</llo_original>
